<compile_context>
chip_gen: v7x
topology: tpu7x:2x2x1
jax: 0.10.0
libtpu: 0.0.40
codegen_flags: <defaults>
</compile_context>

<pallas_src>
import jax
import jax.numpy as jnp
from jax.experimental import pallas as pl
from jax.experimental.pallas import tpu as pltpu

LANE = 128


def _round_up(x, m):
    return ((x + m - 1) // m) * m


def actor_mlp_kernel(x_ref, w1_ref, b1_ref, w2_ref, b2_ref, w3_ref, b3_ref, o_ref):
    # One batch tile resident in VMEM; three MXU matmuls with f32 accumulation,
    # bias adds / ReLU / tanh in f32 (v5e's VPU/EUP have no bf16).
    cdt = w1_ref.dtype
    x = x_ref[...].astype(cdt)

    h1 = jnp.dot(x, w1_ref[...], preferred_element_type=jnp.float32) + b1_ref[...]
    h1 = jnp.maximum(h1, 0.0)                                         # ReLU (f32)

    h2 = jnp.dot(h1.astype(cdt), w2_ref[...],
                 preferred_element_type=jnp.float32) + b2_ref[...]
    h2 = jnp.maximum(h2, 0.0)                                         # ReLU (f32)

    h3 = jnp.dot(h2.astype(cdt), w3_ref[...],
                 preferred_element_type=jnp.float32) + b3_ref[...]    # (tile_b, Ap)

    a = o_ref.shape[1]                                                # real action_dim
    o_ref[...] = jnp.tanh(h3[:, :a]).astype(o_ref.dtype)              # narrow store only


def prepare_actor_params(params, compute_dtype=jnp.bfloat16):
    """One-time parameter prep: pad narrow dims to lane width, cast matmul operands.

    Do this ONCE (not per forward call).  Biases stay f32 (added to the f32 accumulator).
    """
    w1, b1, w2, b2, w3, b3 = params
    S, H1 = w1.shape
    H2 = w2.shape[1]
    A = w3.shape[1]
    H2p = _round_up(H2, LANE)   # 64  -> 128 (lane-dense K for layer 3)
    Ap = _round_up(A, LANE)     # A   -> 128 (lane-dense MXU result for layer 3)

    w2p = jnp.zeros((H1, H2p), jnp.float32).at[:, :H2].set(w2)
    b2p = jnp.zeros((1, H2p), jnp.float32).at[:, :H2].set(jnp.reshape(b2, (1, H2)))
    w3p = jnp.zeros((H2p, Ap), jnp.float32).at[:H2, :A].set(w3)
    b3p = jnp.zeros((1, Ap), jnp.float32).at[:, :A].set(jnp.reshape(b3, (1, A)))

    return {
        "w1": w1.astype(compute_dtype),
        "b1": jnp.reshape(b1, (1, H1)).astype(jnp.float32),
        "w2": w2p.astype(compute_dtype),
        "b2": b2p,
        "w3": w3p.astype(compute_dtype),
        "b3": b3p,
        "dims": (S, H1, H2p, Ap, A),
    }


def _choose_tile(B, requested, align):
    """Workload-sized batch tile (multiple of `align`, never larger than needed)."""
    requested = max(align, (int(requested) // align) * align)
    if B > requested:
        return requested                          # throughput path: big tiles, many of them
    if B >= 4 * align:
        return _round_up(-(-B // 2), align)       # medium B: >=2 tiles (both v7x TCs busy)
    return _round_up(B, align)                    # tiny RL batch: one exact tile


def actor_forward(states, prepped, *, tile_b=1024):
    """states: (B, state_dim). prepped: output of prepare_actor_params. Returns (B, action_dim) f32."""
    B, S = states.shape
    S2, H1, H2p, Ap, A = prepped["dims"]
    assert S == S2, "state_dim mismatch"
    cdt = prepped["w1"].dtype
    align = 16 if cdt == jnp.bfloat16 else 8

    tile_b = _choose_tile(B, tile_b, align)

    # Only the tiny-batch path pads (a handful of rows).  Larger batches use a cdiv grid and
    # let Pallas mask the ragged last tile (no full-array pad pass through HBM).
    x = states
    if B < tile_b:
        x = jnp.pad(x, ((0, tile_b - B), (0, 0)))
    B_in = x.shape[0]
    num_tiles = pl.cdiv(B_in, tile_b)

    op_bytes = jnp.dtype(cdt).itemsize
    in_bytes = jnp.dtype(x.dtype).itemsize
    weight_bytes = (S * H1 + H1 * H2p + H2p * Ap) * op_bytes + (H1 + H2p + Ap) * 4
    cost = pl.CostEstimate(
        flops=2 * num_tiles * tile_b * (S * H1 + H1 * H2p + H2p * Ap),
        transcendentals=num_tiles * tile_b * A,
        bytes_accessed=B_in * S * in_bytes + weight_bytes + B_in * A * 4,
    )

    # Scoped-VMEM headroom only needed for very large tiles; demo tiles never trigger this.
    vmem_est = (2 * tile_b * (S * in_bytes + A * 4)      # double-buffered in/out blocks
                + 2 * weight_bytes                        # resident weights (buffered)
                + tile_b * (H1 + H2p + Ap) * 4)           # f32 intermediates
    vmem_limit = None
    if vmem_est > 12 * (1 << 20):
        vmem_limit = min(int(vmem_est * 3 // 2) + (4 << 20), 100 << 20)

    out = pl.pallas_call(
        actor_mlp_kernel,
        out_shape=jax.ShapeDtypeStruct((B_in, A), jnp.float32),
        grid_spec=pltpu.PrefetchScalarGridSpec(
            num_scalar_prefetch=0,
            grid=(num_tiles,),
            in_specs=[
                # batch tile of the states (native dtype; cast to matmul dtype in-kernel)
                pl.BlockSpec((tile_b, S), lambda i: (i, 0)),
                # full weight / bias tensors resident in VMEM (tiny: < 1 MiB total)
                pl.BlockSpec((S, H1), lambda i: (0, 0)),
                pl.BlockSpec((1, H1), lambda i: (0, 0)),
                pl.BlockSpec((H1, H2p), lambda i: (0, 0)),
                pl.BlockSpec((1, H2p), lambda i: (0, 0)),
                pl.BlockSpec((H2p, Ap), lambda i: (0, 0)),
                pl.BlockSpec((1, Ap), lambda i: (0, 0)),
            ],
            # narrow (action_dim-wide) output block: last dim equals the full array dim
            out_specs=pl.BlockSpec((tile_b, A), lambda i: (i, 0)),
        ),
        compiler_params=pltpu.CompilerParams(
            dimension_semantics=("parallel",),
            vmem_limit_bytes=vmem_limit,
        ),
        cost_estimate=cost,
    )(x, prepped["w1"], prepped["b1"], prepped["w2"], prepped["b2"],
      prepped["w3"], prepped["b3"])

    return out[:B] if B_in != B else out


def init_actor_params(key, state_dim, action_dim):
    """Deterministic init matching PyTorch nn.Linear default (U[-1/sqrt(fan_in), +1/sqrt(fan_in)])."""
    dims = [(state_dim, 256), (256, 64), (64, action_dim)]
    params = []
    for (fan_in, fan_out) in dims:
        key, kw, kb = jax.random.split(key, 3)
        bound = 1.0 / jnp.sqrt(float(fan_in))
        w = jax.random.uniform(kw, (fan_in, fan_out), jnp.float32, -bound, bound)
        b = jax.random.uniform(kb, (1, fan_out), jnp.float32, -bound, bound)
        params += [w, b]
    return tuple(params)


def _reference(states, params):
    w1, b1, w2, b2, w3, b3 = params
    return jnp.tanh(
        jnp.maximum(jnp.maximum(states @ w1 + b1, 0.0) @ w2 + b2, 0.0) @ w3 + b3
    )


if __name__ == "__main__":
    state_dim = 32
    action_dim = 8
    batch = 8

    key = jax.random.PRNGKey(0)
    key, kx, kx2, kx3 = jax.random.split(key, 4)
    states = jax.random.normal(kx, (batch, state_dim), jnp.float32)
    params = init_actor_params(key, state_dim, action_dim)
    ref = _reference(states, params)

    # --- exact f32 matmul path (matches PyTorch f32 semantics) ---
    prep_f32 = prepare_actor_params(params, compute_dtype=jnp.float32)
    out_f32 = jax.block_until_ready(actor_forward(states, prep_f32, tile_b=1024))
    assert out_f32.shape == (batch, action_dim)
    assert jnp.allclose(out_f32, ref, atol=1e-5, rtol=1e-5)

    # --- bf16 matmul-operand path (native MXU on v6e/v7x); activations quantized -> loose tol ---
    prep_bf16 = prepare_actor_params(params, compute_dtype=jnp.bfloat16)
    out_bf16 = jax.block_until_ready(actor_forward(states, prep_bf16, tile_b=1024))
    assert jnp.allclose(out_bf16, ref, atol=5e-2, rtol=5e-2)

    # --- tiny non-multiple batch (B=5): right-sized single tile, minimal row pad ---
    states_odd = jax.random.normal(kx2, (5, state_dim), jnp.float32)
    out_odd = jax.block_until_ready(actor_forward(states_odd, prep_f32))
    assert out_odd.shape == (5, action_dim)
    assert jnp.allclose(out_odd, _reference(states_odd, params), atol=1e-5, rtol=1e-5)

    # --- medium batch (B=70): 2 parallel tiles + ragged last tile (masked writeback) ---
    states_big = jax.random.normal(kx3, (70, state_dim), jnp.float32)
    out_big = jax.block_until_ready(actor_forward(states_big, prep_f32, tile_b=1024))
    assert out_big.shape == (70, action_dim)
    assert jnp.allclose(out_big, _reference(states_big, params), atol=1e-5, rtol=1e-5)

    print("KERNEL_OK")
</pallas_src>

<mosaic_0001>
module attributes {stable_mosaic.version = 11 : i64} {
  func.func @actor_mlp_kernel(%arg0: i32, %arg1: memref<8x32xf32, #tpu.memory_space<vmem>>, %arg2: memref<32x256xf32, #tpu.memory_space<vmem>>, %arg3: memref<1x256xf32, #tpu.memory_space<vmem>>, %arg4: memref<256x128xf32, #tpu.memory_space<vmem>>, %arg5: memref<1x128xf32, #tpu.memory_space<vmem>>, %arg6: memref<128x128xf32, #tpu.memory_space<vmem>>, %arg7: memref<1x128xf32, #tpu.memory_space<vmem>>, %arg8: memref<8x8xf32, #tpu.memory_space<vmem>>) attributes {dimension_semantics = [#tpu.dimension_semantics<parallel>], iteration_bounds = array<i64: 1>, scalar_prefetch = 0 : i64, scratch_operands = 0 : i64, tpu.core_type = #tpu.core_type<tc>, window_params = [{transform_indices = @transform_0, window_bounds = array<i64: 8, 32>}, {pipeline_mode = #tpu.pipeline_mode<synchronous>, transform_indices = @transform_1, window_bounds = array<i64: 32, 256>}, {pipeline_mode = #tpu.pipeline_mode<synchronous>, transform_indices = @transform_2, window_bounds = array<i64: 1, 256>}, {pipeline_mode = #tpu.pipeline_mode<synchronous>, transform_indices = @transform_3, window_bounds = array<i64: 256, 128>}, {pipeline_mode = #tpu.pipeline_mode<synchronous>, transform_indices = @transform_4, window_bounds = array<i64: 1, 128>}, {pipeline_mode = #tpu.pipeline_mode<synchronous>, transform_indices = @transform_5, window_bounds = array<i64: 128, 128>}, {pipeline_mode = #tpu.pipeline_mode<synchronous>, transform_indices = @transform_6, window_bounds = array<i64: 1, 128>}, {transform_indices = @transform_7, window_bounds = array<i64: 8, 8>}]} {
    %c0 = arith.constant 0 : index
    %c0_0 = arith.constant 0 : index
    %0 = vector.load %arg1[%c0, %c0_0] : memref<8x32xf32, #tpu.memory_space<vmem>>, vector<8x32xf32>
    %c0_1 = arith.constant 0 : index
    %c0_2 = arith.constant 0 : index
    %1 = vector.load %arg2[%c0_1, %c0_2] : memref<32x256xf32, #tpu.memory_space<vmem>>, vector<32x256xf32>
    %cst = arith.constant dense<0.000000e+00> : vector<8x256xf32>
    %2 = tpu.matmul %0, %1, %cst {dimension_numbers = #tpu.dot_dimension_numbers<[1], [0], [0], [1], [0, 0, 1, 1], [], []>} : vector<8x32xf32>, vector<32x256xf32>, vector<8x256xf32> -> vector<8x256xf32>
    %c0_3 = arith.constant 0 : index
    %c0_4 = arith.constant 0 : index
    %3 = vector.load %arg3[%c0_3, %c0_4] : memref<1x256xf32, #tpu.memory_space<vmem>>, vector<1x256xf32>
    %4 = vector.broadcast %3 : vector<1x256xf32> to vector<8x256xf32>
    %5 = arith.addf %2, %4 : vector<8x256xf32>
    %cst_5 = arith.constant 0.000000e+00 : f32
    %6 = vector.broadcast %cst_5 : f32 to vector<8x256xf32>
    %7 = arith.maximumf %5, %6 : vector<8x256xf32>
    %c0_6 = arith.constant 0 : index
    %c0_7 = arith.constant 0 : index
    %8 = vector.load %arg4[%c0_6, %c0_7] : memref<256x128xf32, #tpu.memory_space<vmem>>, vector<256x128xf32>
    %cst_8 = arith.constant dense<0.000000e+00> : vector<8x128xf32>
    %9 = tpu.matmul %7, %8, %cst_8 {dimension_numbers = #tpu.dot_dimension_numbers<[1], [0], [0], [1], [0, 0, 1, 1], [], []>} : vector<8x256xf32>, vector<256x128xf32>, vector<8x128xf32> -> vector<8x128xf32>
    %c0_9 = arith.constant 0 : index
    %c0_10 = arith.constant 0 : index
    %10 = vector.load %arg5[%c0_9, %c0_10] : memref<1x128xf32, #tpu.memory_space<vmem>>, vector<1x128xf32>
    %11 = vector.broadcast %10 : vector<1x128xf32> to vector<8x128xf32>
    %12 = arith.addf %9, %11 : vector<8x128xf32>
    %cst_11 = arith.constant 0.000000e+00 : f32
    %13 = vector.broadcast %cst_11 : f32 to vector<8x128xf32>
    %14 = arith.maximumf %12, %13 : vector<8x128xf32>
    %c0_12 = arith.constant 0 : index
    %c0_13 = arith.constant 0 : index
    %15 = vector.load %arg6[%c0_12, %c0_13] : memref<128x128xf32, #tpu.memory_space<vmem>>, vector<128x128xf32>
    %cst_14 = arith.constant dense<0.000000e+00> : vector<8x128xf32>
    %16 = tpu.matmul %14, %15, %cst_14 {dimension_numbers = #tpu.dot_dimension_numbers<[1], [0], [0], [1], [0, 0, 1, 1], [], []>} : vector<8x128xf32>, vector<128x128xf32>, vector<8x128xf32> -> vector<8x128xf32>
    %c0_15 = arith.constant 0 : index
    %c0_16 = arith.constant 0 : index
    %17 = vector.load %arg7[%c0_15, %c0_16] : memref<1x128xf32, #tpu.memory_space<vmem>>, vector<1x128xf32>
    %18 = vector.broadcast %17 : vector<1x128xf32> to vector<8x128xf32>
    %19 = arith.addf %16, %18 : vector<8x128xf32>
    %20 = vector.extract_strided_slice %19 {offsets = [0, 0], sizes = [8, 8], strides = [1, 1]} : vector<8x128xf32> to vector<8x8xf32>
    %21 = math.tanh %20 : vector<8x8xf32>
    %c0_17 = arith.constant 0 : index
    %c0_18 = arith.constant 0 : index
    %22 = vector.load %arg8[%c0_17, %c0_18] : memref<8x8xf32, #tpu.memory_space<vmem>>, vector<8x8xf32>
    tpu.vector_store %arg8[%c0_17, %c0_18], %21 {strides = array<i32>} : memref<8x8xf32, #tpu.memory_space<vmem>>, vector<8x8xf32>,
    return
  }
  func.func @transform_0(%arg0: i32) -> (i32, i32) {
    %c0_i32 = arith.constant 0 : i32
    %c0_i32_0 = arith.constant 0 : i32
    return %arg0, %c0_i32 : i32, i32
  }
  func.func @transform_1(%arg0: i32) -> (i32, i32) {
    %c0_i32 = arith.constant 0 : i32
    %c0_i32_0 = arith.constant 0 : i32
    %c0_i32_1 = arith.constant 0 : i32
    return %c0_i32, %c0_i32_0 : i32, i32
  }
  func.func @transform_2(%arg0: i32) -> (i32, i32) {
    %c0_i32 = arith.constant 0 : i32
    %c0_i32_0 = arith.constant 0 : i32
    %c0_i32_1 = arith.constant 0 : i32
    return %c0_i32, %c0_i32_0 : i32, i32
  }
  func.func @transform_3(%arg0: i32) -> (i32, i32) {
    %c0_i32 = arith.constant 0 : i32
    %c0_i32_0 = arith.constant 0 : i32
    %c0_i32_1 = arith.constant 0 : i32
    return %c0_i32, %c0_i32_0 : i32, i32
  }
  func.func @transform_4(%arg0: i32) -> (i32, i32) {
    %c0_i32 = arith.constant 0 : i32
    %c0_i32_0 = arith.constant 0 : i32
    %c0_i32_1 = arith.constant 0 : i32
    return %c0_i32, %c0_i32_0 : i32, i32
  }
  func.func @transform_5(%arg0: i32) -> (i32, i32) {
    %c0_i32 = arith.constant 0 : i32
    %c0_i32_0 = arith.constant 0 : i32
    %c0_i32_1 = arith.constant 0 : i32
    return %c0_i32, %c0_i32_0 : i32, i32
  }
  func.func @transform_6(%arg0: i32) -> (i32, i32) {
    %c0_i32 = arith.constant 0 : i32
    %c0_i32_0 = arith.constant 0 : i32
    %c0_i32_1 = arith.constant 0 : i32
    return %c0_i32, %c0_i32_0 : i32, i32
  }
  func.func @transform_7(%arg0: i32) -> (i32, i32) {
    %c0_i32 = arith.constant 0 : i32
    %c0_i32_0 = arith.constant 0 : i32
    return %arg0, %c0_i32 : i32, i32
  }
}

</mosaic_0001>

<llo_original>
// kernel: tpu_custom_call.1
$region0: #{tpu_custom_call.1}
  #allocation0 [shape = 'u32[]', space=smem, size = 0x4, offset = 0x4, fixed_abs, tag = 'smem constant byte address 0x4 - core index']
  #allocation1 [shape = 'u32[144,128]{1,0:T(1,128)}', space=vmem, size = 0x12000, scoped, tag = 'internal scratch']
  %s0 = inlined_call_operand.hbm [shape: f32[8,32], index: 0, kind: input, shape index: {}]
  %s1 = inlined_call_operand.hbm [shape: f32[32,256], index: 1, kind: input, shape index: {}]
  %s2 = inlined_call_operand.vmem [shape: f32[1,256], index: 2, kind: input, shape index: {}]
  %s3 = inlined_call_operand.hbm [shape: f32[256,128], index: 3, kind: input, shape index: {}]
  %s4 = inlined_call_operand.vmem [shape: f32[1,128], index: 4, kind: input, shape index: {}]
  %s5 = inlined_call_operand.hbm [shape: f32[128,128], index: 5, kind: input, shape index: {}]
  %s6 = inlined_call_operand.vmem [shape: f32[1,128], index: 6, kind: input, shape index: {}]
  %s7 = inlined_call_operand.hbm [shape: f32[8,8], index: 7, kind: output, shape index: {}]
  %s8 = sld [smem:[#allocation0]]
  $region54: #{tpu_custom_call.1} parent=0
    _
  %s10 = ssub.s32 1, %s8
  %s11 = scalar_select 0, %s10, %s8
  $region1: #{tpu_custom_call.1} parent=0
    #allocation2 [shape = 'u8[4096]{0}', space=vmem, size = 0x1000, scoped, tag = 'input window, operand 0, single buffered']
    #allocation3 [shape = 's32[1]{0}', space=sflag, size = 0x4, scoped, tag = 'scoped memory for tpu_custom_call.1']
    #allocation4 [shape = 's32[1]{0}', space=sflag, size = 0x4, scoped, tag = 'scoped memory for tpu_custom_call.1']
    #allocation5 [shape = 'u8[32768]{0}', space=vmem, size = 0x8000, scoped, tag = 'input window, operand 1, single buffered']
    #allocation6 [shape = 's32[1]{0}', space=sflag, size = 0x4, scoped, tag = 'scoped memory for tpu_custom_call.1']
    #allocation7 [shape = 'u8[131072]{0}', space=vmem, size = 0x20000, scoped, tag = 'input window, operand 3, single buffered']
    #allocation8 [shape = 'u8[65536]{0}', space=vmem, size = 0x10000, scoped, tag = 'input window, operand 5, single buffered']
    #allocation9 [shape = 's32[1]{0}', space=sflag, size = 0x4, scoped, tag = 'scoped memory for tpu_custom_call.1']
    #allocation10 [shape = 'u8[4096]{0}', space=vmem, size = 0x1000, scoped, tag = 'output window, operand 0, single buffered']
    %12 = vsyncpa [#allocation3], 0
    %13 = vsyncpa [#allocation6], 0
    %14 = vsyncpa [#allocation9], 0
    %15 = vsyncpa [#allocation4], 0
    // Predicated region
    $region2: #{tpu_custom_call.1} parent=1 // pred_check
      _
    $region3: #{tpu_custom_call.1} parent=1 // pred_check_branch
      %17 = sbr.rel (0) target = $region5
    $region4: #{tpu_custom_call.1} parent=1 // pred_region
      %s19 = ssub.s32 128, 128
      %20 = vsyncadd [#allocation3], %s19
      %s22 = sshll.u32 [#allocation2], 4
      %s23 = int_to_ptr.vmem [resolvable:$true] %s22
      %25 = dma.hbm_to_vmem [thread:$0]  %s0, 128, %s23, [#allocation3]
    $region5: #{tpu_custom_call.1} parent=1 // pred_fallthru
      _
    // Predicated region
    $region6: #{tpu_custom_call.1} parent=1 // pred_check
      _
    $region7: #{tpu_custom_call.1} parent=1 // pred_check_branch
      %27 = sbr.rel (0) target = $region9
    $region8: #{tpu_custom_call.1} parent=1 // pred_region
      %s29 = ssub.s32 1024, 1024
      %30 = vsyncadd [#allocation6], %s29
      %s31 = sshll.u32 [#allocation5], 4
      %s32 = int_to_ptr.vmem [resolvable:$true] %s31
      %37 = dma.hbm_to_vmem [thread:$0]  %s1, 1024, %s32, [#allocation6], 256, 256, 16
    $region9: #{tpu_custom_call.1} parent=1 // pred_fallthru
      _
    // Predicated region
    $region10: #{tpu_custom_call.1} parent=1 // pred_check
      _
    $region11: #{tpu_custom_call.1} parent=1 // pred_check_branch
      %39 = sbr.rel (0) target = $region13
    $region12: #{tpu_custom_call.1} parent=1 // pred_region
      _
    $region13: #{tpu_custom_call.1} parent=1 // pred_fallthru
      _
    // Predicated region
    $region14: #{tpu_custom_call.1} parent=1 // pred_check
      _
    $region15: #{tpu_custom_call.1} parent=1 // pred_check_branch
      %41 = sbr.rel (0) target = $region17
    $region16: #{tpu_custom_call.1} parent=1 // pred_region
      %s43 = ssub.s32 4096, 4096
      %44 = vsyncadd [#allocation6], %s43
      %s45 = sshll.u32 [#allocation7], 4
      %s46 = int_to_ptr.vmem [resolvable:$true] %s45
      %51 = dma.hbm_to_vmem [thread:$0]  %s3, 4096, %s46, [#allocation6], 128, 128, 8
    $region17: #{tpu_custom_call.1} parent=1 // pred_fallthru
      _
    // Predicated region
    $region18: #{tpu_custom_call.1} parent=1 // pred_check
      _
    $region19: #{tpu_custom_call.1} parent=1 // pred_check_branch
      %53 = sbr.rel (0) target = $region21
    $region20: #{tpu_custom_call.1} parent=1 // pred_region
      _
    $region21: #{tpu_custom_call.1} parent=1 // pred_fallthru
      _
    // Predicated region
    $region22: #{tpu_custom_call.1} parent=1 // pred_check
      _
    $region23: #{tpu_custom_call.1} parent=1 // pred_check_branch
      %55 = sbr.rel (0) target = $region25
    $region24: #{tpu_custom_call.1} parent=1 // pred_region
      %s57 = ssub.s32 2048, 2048
      %58 = vsyncadd [#allocation9], %s57
      %s59 = sshll.u32 [#allocation8], 4
      %s60 = int_to_ptr.vmem [resolvable:$true] %s59
      %65 = dma.hbm_to_vmem [thread:$0]  %s5, 2048, %s60, [#allocation9], 128, 128, 8
    $region25: #{tpu_custom_call.1} parent=1 // pred_fallthru
      _
    // Predicated region
    $region26: #{tpu_custom_call.1} parent=1 // pred_check
      _
    $region27: #{tpu_custom_call.1} parent=1 // pred_check_branch
      %67 = sbr.rel (0) target = $region29
    $region28: #{tpu_custom_call.1} parent=1 // pred_region
      _
    $region29: #{tpu_custom_call.1} parent=1 // pred_fallthru
      _
    // Predicated region
    $region30: #{tpu_custom_call.1} parent=1 // pred_check
      _
    $region31: #{tpu_custom_call.1} parent=1 // pred_check_branch
      %69 = sbr.rel (0) target = $region33
    $region32: #{tpu_custom_call.1} parent=1 // pred_region
      %70 = dma.done [#allocation3], 128
    $region33: #{tpu_custom_call.1} parent=1 // pred_fallthru
      _
    // Predicated region
    $region34: #{tpu_custom_call.1} parent=1 // pred_check
      _
    $region35: #{tpu_custom_call.1} parent=1 // pred_check_branch
      %72 = sbr.rel (0) target = $region37
    $region36: #{tpu_custom_call.1} parent=1 // pred_region
      %73 = dma.done [#allocation6], 1024
    $region37: #{tpu_custom_call.1} parent=1 // pred_fallthru
      _
    // Predicated region
    $region38: #{tpu_custom_call.1} parent=1 // pred_check
      _
    $region39: #{tpu_custom_call.1} parent=1 // pred_check_branch
      %75 = sbr.rel (0) target = $region41
    $region40: #{tpu_custom_call.1} parent=1 // pred_region
      %76 = dma.done [#allocation6], 4096
    $region41: #{tpu_custom_call.1} parent=1 // pred_fallthru
      _
    // Predicated region
    $region42: #{tpu_custom_call.1} parent=1 // pred_check
      _
    $region43: #{tpu_custom_call.1} parent=1 // pred_check_branch
      %78 = sbr.rel (0) target = $region45
    $region44: #{tpu_custom_call.1} parent=1 // pred_region
      %79 = dma.done [#allocation9], 2048
    $region45: #{tpu_custom_call.1} parent=1 // pred_fallthru
      _
    %v80 = vld [vmem:[#allocation2] sm:$0xff]
    %v81 = vld [vmem:[#allocation5] sm:$0xff]
    %v82 = vld [vmem:[#allocation5 + $0x8] sm:$0xff]
    %v83 = vld [vmem:[#allocation5 + $0x10] sm:$0xff]
    %v84 = vld [vmem:[#allocation5 + $0x18] sm:$0xff]
    %v85 = vld [vmem:[#allocation5 + $0x20] sm:$0xff]
    %v86 = vld [vmem:[#allocation5 + $0x28] sm:$0xff]
    %v87 = vld [vmem:[#allocation5 + $0x30] sm:$0xff]
    %v88 = vld [vmem:[#allocation5 + $0x38] sm:$0xff]
    %v89 = vld [vmem:[%s2] sm:$0x3]
    %v91 = vlaneseq
    %v92 = vshrl.u32 %v91, 7
    %v93 = vsub.s32 0, %v92
    %v94 = vrot.slane %v89, %v93
    %v95 = vlaneseq
    %v96 = vshrl.u32 %v95, 7
    %v97 = vsub.s32 1, %v96
    %v98 = vrot.slane %v89, %v97
    %vm101 = vcmask 261120
    %v103 = vsel %vm101, %v80, 0
    %105 = vmatprep.subr.mxu0 %v82
    %106 = vmatpush1.msra.mxu0 %v81
    %107 = vmatprep.subr.mxu0 %v84
    %108 = vmatpush1.msra.mxu0 %v83
    %109 = vmatprep.subr.mxu0 %v86
    %110 = vmatpush1.msra.mxu0 %v85
    %111 = vmatprep.subr.mxu0 %v88
    %112 = vmatpush1.msra.mxu0 %v87
    %113 = vmatprep.subr.mxu0 0.0
    %114 = vmatpush1.msra.mxu0 0.0
    %115 = vmatprep.subr.mxu0 0.0
    %116 = vmatpush1.msra.mxu0 0.0
    %117 = vmatprep.subr.mxu0 0.0
    %118 = vmatpush1.msra.mxu0 0.0
    %119 = vmatprep.subr.mxu0 0.0
    %120 = vmatpush1.msra.mxu0 0.0
    %121 = vmatprep.subr.mxu0 0.0
    %122 = vmatpush1.msra.mxu0 0.0
    %123 = vmatprep.subr.mxu0 0.0
    %124 = vmatpush1.msra.mxu0 0.0
    %125 = vmatprep.subr.mxu0 0.0
    %126 = vmatpush1.msra.mxu0 0.0
    %127 = vmatprep.subr.mxu0 0.0
    %128 = vmatpush1.msra.mxu0 0.0
    %129 = vmatprep.subr.mxu0 0.0
    %130 = vmatpush1.msra.mxu0 0.0
    %131 = vmatprep.subr.mxu0 0.0
    %132 = vmatpush1.msra.mxu0 0.0
    %133 = vmatprep.subr.mxu0 0.0
    %134 = vmatpush1.msra.mxu0 0.0
    %135 = vmatprep.subr.mxu0 0.0
    %136 = vmatpush1.msra.mxu0 0.0
    %137 = vmatprep.subr.mxu0 0.0
    %138 = vmatpush1.msra.mxu0 0.0
    %139 = vmatprep.subr.mxu0 0.0
    %140 = vmatpush1.msra.mxu0 0.0
    %141 = vmatprep.subr.mxu0 0.0
    %142 = vmatpush1.msra.mxu0 0.0
    %143 = vmatprep.subr.mxu0 0.0
    %144 = vmatpush1.msra.mxu0 0.0
    %145 = vmatprep.subr.mxu0 0.0
    %146 = vmatpush1.msra.mxu0 0.0
    %147 = vmatprep.subr.mxu0 0.0
    %148 = vmatpush1.msra.mxu0 0.0
    %149 = vmatprep.subr.mxu0 0.0
    %150 = vmatpush1.msra.mxu0 0.0
    %151 = vmatprep.subr.mxu0 0.0
    %152 = vmatpush1.msra.mxu0 0.0
    %153 = vmatprep.subr.mxu0 0.0
    %154 = vmatpush1.msra.mxu0 0.0
    %155 = vmatprep.subr.mxu0 0.0
    %156 = vmatpush1.msra.mxu0 0.0
    %157 = vmatprep.subr.mxu0 0.0
    %158 = vmatpush1.msra.mxu0 0.0
    %159 = vmatprep.subr.mxu0 0.0
    %160 = vmatpush1.msra.mxu0 0.0
    %161 = vmatprep.subr.mxu0 0.0
    %162 = vmatpush1.msra.mxu0 0.0
    %163 = vmatprep.subr.mxu0 0.0
    %164 = vmatpush1.msra.mxu0 0.0
    %165 = vmatprep.subr.mxu0 0.0
    %166 = vmatpush1.msra.mxu0 0.0
    %167 = vmatprep.subr.mxu0 0.0
    %168 = vmatpush1.msra.mxu0 0.0
    %169 = vmatprep.mubr.f32.mxu0 0.0
    %170 = vmatmul.mubr.f32.gmra.mrb[0].mxu0 %v103
    %v171 = vpop.f32.mrb[0].mxu0
    %v172 = vadd.f32 %v94, %v171
    %v173 = vpop.f32.mrb[0].mxu0
    %v174 = vadd.f32 %v98, %v173
    %175 = vdwg.mxu0
    %v176 = vmax.f32 %v172, 0.0
    %v177 = vmax.f32 %v174, 0.0
    %v178 = vld [vmem:[#allocation7] sm:$0xff]
    %v179 = vld [vmem:[#allocation7 + $0x8] sm:$0xff]
    %v180 = vld [vmem:[#allocation7 + $0x10] sm:$0xff]
    %v181 = vld [vmem:[#allocation7 + $0x18] sm:$0xff]
    %v182 = vld [vmem:[#allocation7 + $0x20] sm:$0xff]
    %v183 = vld [vmem:[#allocation7 + $0x28] sm:$0xff]
    %v184 = vld [vmem:[#allocation7 + $0x30] sm:$0xff]
    %v185 = vld [vmem:[#allocation7 + $0x38] sm:$0xff]
    %v186 = vld [vmem:[#allocation7 + $0x40] sm:$0xff]
    %v187 = vld [vmem:[#allocation7 + $0x48] sm:$0xff]
    %v188 = vld [vmem:[#allocation7 + $0x50] sm:$0xff]
    %v189 = vld [vmem:[#allocation7 + $0x58] sm:$0xff]
    %v190 = vld [vmem:[#allocation7 + $0x60] sm:$0xff]
    %v191 = vld [vmem:[#allocation7 + $0x68] sm:$0xff]
    %v192 = vld [vmem:[#allocation7 + $0x70] sm:$0xff]
    %v193 = vld [vmem:[#allocation7 + $0x78] sm:$0xff]
    %v194 = vld [vmem:[#allocation7 + $0x80] sm:$0xff]
    %v195 = vld [vmem:[#allocation7 + $0x88] sm:$0xff]
    %v196 = vld [vmem:[#allocation7 + $0x90] sm:$0xff]
    %v197 = vld [vmem:[#allocation7 + $0x98] sm:$0xff]
    %v198 = vld [vmem:[#allocation7 + $0xa0] sm:$0xff]
    %v199 = vld [vmem:[#allocation7 + $0xa8] sm:$0xff]
    %v200 = vld [vmem:[#allocation7 + $0xb0] sm:$0xff]
    %v201 = vld [vmem:[#allocation7 + $0xb8] sm:$0xff]
    %v202 = vld [vmem:[#allocation7 + $0xc0] sm:$0xff]
    %v203 = vld [vmem:[#allocation7 + $0xc8] sm:$0xff]
    %v204 = vld [vmem:[#allocation7 + $0xd0] sm:$0xff]
    %v205 = vld [vmem:[#allocation7 + $0xd8] sm:$0xff]
    %v206 = vld [vmem:[#allocation7 + $0xe0] sm:$0xff]
    %v207 = vld [vmem:[#allocation7 + $0xe8] sm:$0xff]
    %v208 = vld [vmem:[#allocation7 + $0xf0] sm:$0xff]
    %v209 = vld [vmem:[#allocation7 + $0xf8] sm:$0xff]
    %v210 = vld [vmem:[%s4] sm:$0x1]
    %v212 = vlaneseq
    %v213 = vshrl.u32 %v212, 7
    %v214 = vsub.s32 0, %v213
    %v215 = vrot.slane %v210, %v214
    %217 = vmatprep.subr.mxu0 0.0
    %218 = vmatpush1.msra.mxu0 %v178
    %219 = vmatprep.subr.mxu0 0.0
    %220 = vmatpush1.msra.mxu0 %v179
    %221 = vmatprep.subr.mxu0 0.0
    %222 = vmatpush1.msra.mxu0 %v180
    %223 = vmatprep.subr.mxu0 0.0
    %224 = vmatpush1.msra.mxu0 %v181
    %225 = vmatprep.subr.mxu0 0.0
    %226 = vmatpush1.msra.mxu0 %v182
    %227 = vmatprep.subr.mxu0 0.0
    %228 = vmatpush1.msra.mxu0 %v183
    %229 = vmatprep.subr.mxu0 0.0
    %230 = vmatpush1.msra.mxu0 %v184
    %231 = vmatprep.subr.mxu0 0.0
    %232 = vmatpush1.msra.mxu0 %v185
    %233 = vmatprep.subr.mxu0 0.0
    %234 = vmatpush1.msra.mxu0 %v186
    %235 = vmatprep.subr.mxu0 0.0
    %236 = vmatpush1.msra.mxu0 %v187
    %237 = vmatprep.subr.mxu0 0.0
    %238 = vmatpush1.msra.mxu0 %v188
    %239 = vmatprep.subr.mxu0 0.0
    %240 = vmatpush1.msra.mxu0 %v189
    %241 = vmatprep.subr.mxu0 0.0
    %242 = vmatpush1.msra.mxu0 %v190
    %243 = vmatprep.subr.mxu0 0.0
    %244 = vmatpush1.msra.mxu0 %v191
    %245 = vmatprep.subr.mxu0 0.0
    %246 = vmatpush1.msra.mxu0 %v192
    %247 = vmatprep.subr.mxu0 0.0
    %248 = vmatpush1.msra.mxu0 %v193
    %249 = vmatprep.subr.mxu0 0.0
    %250 = vmatpush1.msra.mxu0 %v194
    %251 = vmatprep.subr.mxu0 0.0
    %252 = vmatpush1.msra.mxu0 %v195
    %253 = vmatprep.subr.mxu0 0.0
    %254 = vmatpush1.msra.mxu0 %v196
    %255 = vmatprep.subr.mxu0 0.0
    %256 = vmatpush1.msra.mxu0 %v197
    %257 = vmatprep.subr.mxu0 0.0
    %258 = vmatpush1.msra.mxu0 %v198
    %259 = vmatprep.subr.mxu0 0.0
    %260 = vmatpush1.msra.mxu0 %v199
    %261 = vmatprep.subr.mxu0 0.0
    %262 = vmatpush1.msra.mxu0 %v200
    %263 = vmatprep.subr.mxu0 0.0
    %264 = vmatpush1.msra.mxu0 %v201
    %265 = vmatprep.subr.mxu0 0.0
    %266 = vmatpush1.msra.mxu0 %v202
    %267 = vmatprep.subr.mxu0 0.0
    %268 = vmatpush1.msra.mxu0 %v203
    %269 = vmatprep.subr.mxu0 0.0
    %270 = vmatpush1.msra.mxu0 %v204
    %271 = vmatprep.subr.mxu0 0.0
    %272 = vmatpush1.msra.mxu0 %v205
    %273 = vmatprep.subr.mxu0 0.0
    %274 = vmatpush1.msra.mxu0 %v206
    %275 = vmatprep.subr.mxu0 0.0
    %276 = vmatpush1.msra.mxu0 %v207
    %277 = vmatprep.subr.mxu0 0.0
    %278 = vmatpush1.msra.mxu0 %v208
    %279 = vmatprep.subr.mxu0 0.0
    %280 = vmatpush1.msra.mxu0 %v209
    %281 = vmatprep.mubr.f32.mxu0 %v177
    %282 = vmatmul.mubr.f32.gmra.mrb[0].mxu0 %v176
    %v283 = vpop.f32.mrb[0].mxu0
    %v284 = vadd.f32 %v215, %v283
    %v285 = vpop.f32.mrb[0].mxu0
    %286 = vdwg.mxu0
    %v287 = vmax.f32 %v284, 0.0
    %v288 = vld [vmem:[#allocation8] sm:$0xff]
    %v289 = vld [vmem:[#allocation8 + $0x8] sm:$0xff]
    %v290 = vld [vmem:[#allocation8 + $0x10] sm:$0xff]
    %v291 = vld [vmem:[#allocation8 + $0x18] sm:$0xff]
    %v292 = vld [vmem:[#allocation8 + $0x20] sm:$0xff]
    %v293 = vld [vmem:[#allocation8 + $0x28] sm:$0xff]
    %v294 = vld [vmem:[#allocation8 + $0x30] sm:$0xff]
    %v295 = vld [vmem:[#allocation8 + $0x38] sm:$0xff]
    %v296 = vld [vmem:[#allocation8 + $0x40] sm:$0xff]
    %v297 = vld [vmem:[#allocation8 + $0x48] sm:$0xff]
    %v298 = vld [vmem:[#allocation8 + $0x50] sm:$0xff]
    %v299 = vld [vmem:[#allocation8 + $0x58] sm:$0xff]
    %v300 = vld [vmem:[#allocation8 + $0x60] sm:$0xff]
    %v301 = vld [vmem:[#allocation8 + $0x68] sm:$0xff]
    %v302 = vld [vmem:[#allocation8 + $0x70] sm:$0xff]
    %v303 = vld [vmem:[#allocation8 + $0x78] sm:$0xff]
    %v304 = vld [vmem:[%s6] sm:$0x1]
    %v306 = vlaneseq
    %v307 = vshrl.u32 %v306, 7
    %v308 = vsub.s32 0, %v307
    %v309 = vrot.slane %v304, %v308
    %311 = vmatprep.subr.mxu0 0.0
    %312 = vmatpush1.msra.mxu0 %v288
    %313 = vmatprep.subr.mxu0 0.0
    %314 = vmatpush1.msra.mxu0 %v289
    %315 = vmatprep.subr.mxu0 0.0
    %316 = vmatpush1.msra.mxu0 %v290
    %317 = vmatprep.subr.mxu0 0.0
    %318 = vmatpush1.msra.mxu0 %v291
    %319 = vmatprep.subr.mxu0 0.0
    %320 = vmatpush1.msra.mxu0 %v292
    %321 = vmatprep.subr.mxu0 0.0
    %322 = vmatpush1.msra.mxu0 %v293
    %323 = vmatprep.subr.mxu0 0.0
    %324 = vmatpush1.msra.mxu0 %v294
    %325 = vmatprep.subr.mxu0 0.0
    %326 = vmatpush1.msra.mxu0 %v295
    %327 = vmatprep.subr.mxu0 0.0
    %328 = vmatpush1.msra.mxu0 %v296
    %329 = vmatprep.subr.mxu0 0.0
    %330 = vmatpush1.msra.mxu0 %v297
    %331 = vmatprep.subr.mxu0 0.0
    %332 = vmatpush1.msra.mxu0 %v298
    %333 = vmatprep.subr.mxu0 0.0
    %334 = vmatpush1.msra.mxu0 %v299
    %335 = vmatprep.subr.mxu0 0.0
    %336 = vmatpush1.msra.mxu0 %v300
    %337 = vmatprep.subr.mxu0 0.0
    %338 = vmatpush1.msra.mxu0 %v301
    %339 = vmatprep.subr.mxu0 0.0
    %340 = vmatpush1.msra.mxu0 %v302
    %341 = vmatprep.subr.mxu0 0.0
    %342 = vmatpush1.msra.mxu0 %v303
    %343 = vmatprep.subr.mxu0 0.0
    %344 = vmatpush1.msra.mxu0 0.0
    %345 = vmatprep.subr.mxu0 0.0
    %346 = vmatpush1.msra.mxu0 0.0
    %347 = vmatprep.subr.mxu0 0.0
    %348 = vmatpush1.msra.mxu0 0.0
    %349 = vmatprep.subr.mxu0 0.0
    %350 = vmatpush1.msra.mxu0 0.0
    %351 = vmatprep.subr.mxu0 0.0
    %352 = vmatpush1.msra.mxu0 0.0
    %353 = vmatprep.subr.mxu0 0.0
    %354 = vmatpush1.msra.mxu0 0.0
    %355 = vmatprep.subr.mxu0 0.0
    %356 = vmatpush1.msra.mxu0 0.0
    %357 = vmatprep.subr.mxu0 0.0
    %358 = vmatpush1.msra.mxu0 0.0
    %359 = vmatprep.subr.mxu0 0.0
    %360 = vmatpush1.msra.mxu0 0.0
    %361 = vmatprep.subr.mxu0 0.0
    %362 = vmatpush1.msra.mxu0 0.0
    %363 = vmatprep.subr.mxu0 0.0
    %364 = vmatpush1.msra.mxu0 0.0
    %365 = vmatprep.subr.mxu0 0.0
    %366 = vmatpush1.msra.mxu0 0.0
    %367 = vmatprep.subr.mxu0 0.0
    %368 = vmatpush1.msra.mxu0 0.0
    %369 = vmatprep.subr.mxu0 0.0
    %370 = vmatpush1.msra.mxu0 0.0
    %371 = vmatprep.subr.mxu0 0.0
    %372 = vmatpush1.msra.mxu0 0.0
    %373 = vmatprep.subr.mxu0 0.0
    %374 = vmatpush1.msra.mxu0 0.0
    %375 = vmatprep.mubr.f32.mxu0 0.0
    %376 = vmatmul.mubr.f32.gmra.mrb[0].mxu0 %v287
    %v377 = vpop.f32.mrb[0].mxu0
    %v378 = vadd.f32 %v309, %v377
    %v379 = vpop.f32.mrb[0].mxu0
    %380 = vdwg.mxu0
    %v381 = vtanh.pop %v378
    %vm382 = vcmask 64512
    %383 = vst.msk [vmem:[#allocation10] sm:$0xff] %vm382, %v381
    // Predicated region
    $region46: #{tpu_custom_call.1} parent=1 // pred_check
      _
    $region47: #{tpu_custom_call.1} parent=1 // pred_check_branch
      %385 = sbr.rel (0) target = $region49
    $region48: #{tpu_custom_call.1} parent=1 // pred_region
      %s387 = ssub.s32 128, 128
      %388 = vsyncadd [#allocation4], %s387
      %s390 = sshll.u32 [#allocation10], 4
      %s391 = int_to_ptr.vmem [resolvable:$true] %s390
      %393 = dma.vmem_to_hbm [thread:$0]  %s391, 128, %s7, [#allocation4]
    $region49: #{tpu_custom_call.1} parent=1 // pred_fallthru
      _
    // Predicated region
    $region50: #{tpu_custom_call.1} parent=1 // pred_check
      _
    $region51: #{tpu_custom_call.1} parent=1 // pred_check_branch
      %395 = sbr.rel (0) target = $region53
    $region52: #{tpu_custom_call.1} parent=1 // pred_region
      %396 = dma.done [#allocation4], 128
    $region53: #{tpu_custom_call.1} parent=1 // pred_fallthru
      _
    %397 = vsyncpa [#allocation3], 1
    %398 = vsyncpa [#allocation6], 1
    %399 = vsyncpa [#allocation9], 1
    %400 = vsyncpa [#allocation4], 1

</llo_original>
